<compile_context>
chip_gen: v6e
topology: v6e:2x2x1
jax: 0.10.0
libtpu: 0.0.40
codegen_flags: <defaults>
</compile_context>

<pallas_src>
import functools
import math

import jax
import jax.numpy as jnp
from jax.experimental import pallas as pl
from jax.experimental.pallas import tpu as pltpu


def _round_up(x, m):
    return (x + m - 1) // m * m


def _tpu_generation():
    """Best-effort TPU generation (5/6/7). Defaults to 7 (smallest VMEM budget)."""
    try:
        kind = jax.devices()[0].device_kind.lower()
    except Exception:
        return 7
    for g in (7, 6, 5):
        if f"v{g}" in kind:
            return g
    return 7


# --------------------------------------------------------------------------- #
# Kernels
# --------------------------------------------------------------------------- #
def _mask_linear_kernel_single_k(x_ref, w_ref, m_ref, b_ref, o_ref, *, select_mask):
    """Whole contraction in one grid step: out tile = x @ (w*mask) + bias."""
    if select_mask:
        # Binary int8 mask: select instead of convert+multiply (v5e has no bf16
        # VALU path, so int8->bf16 cast + bf16 mul would be emulated/widened).
        w_masked = jnp.where(m_ref[...] != 0, w_ref[...], jnp.zeros_like(w_ref[...]))
    else:
        w_masked = w_ref[...] * m_ref[...].astype(w_ref.dtype)
    acc = jnp.dot(x_ref[...], w_masked, preferred_element_type=jnp.float32)
    o_ref[...] = (acc + b_ref[...]).astype(o_ref.dtype)


def _mask_linear_kernel_multi_k(x_ref, w_ref, m_ref, b_ref, o_ref, *, select_mask):
    """K-tiled path: f32 output tile is resident across the K ('arbitrary') axis
    and accumulated in place (no scratch, no final copy)."""
    k = pl.program_id(2)
    if select_mask:
        w_masked = jnp.where(m_ref[...] != 0, w_ref[...], jnp.zeros_like(w_ref[...]))
    else:
        w_masked = w_ref[...] * m_ref[...].astype(w_ref.dtype)
    part = jnp.dot(x_ref[...], w_masked, preferred_element_type=jnp.float32)

    @pl.when(k == 0)
    def _():
        o_ref[...] = part + b_ref[...]          # bias (1, tn) broadcasts over rows

    @pl.when(k > 0)
    def _():
        o_ref[...] += part


# --------------------------------------------------------------------------- #
# Tile selection
# --------------------------------------------------------------------------- #
def _select_tiles(M, K, N, *, sub, gen):
    Kp128 = _round_up(K, 128)
    Np128 = _round_up(N, 128)

    # tm: <=256 on v7x (64 MiB VMEM/TC); 512 on v5e/v6e for large-M shapes,
    # which halves the weight/mask re-stream factor Mp/tm.
    tm_cap = 512 if (gen in (5, 6) and M >= 512) else 256
    tm = min(_round_up(M, sub), tm_cap)

    # tk: collapse the contraction into a single grid step when K fits
    # comfortably (no per-k output RMW, no x re-stream across N tiles).
    tk = Kp128 if Kp128 <= 2048 else 1024

    # tn: lane-dense, up to 1024.
    tn = min(Np128, 1024)

    # v7x only: split N across the two TensorCores, but only when the M axis
    # does not already provide >=2 parallel tiles.
    m_tiles = _round_up(M, tm) // tm
    if gen == 7 and m_tiles == 1 and tn == Np128 and tn % 256 == 0:
        tn //= 2

    # Safety: keep the double-buffered footprint inside the per-generation VMEM
    # budget (40 MiB v7x, 64 MiB v5e/v6e). With the caps above this never
    # triggers; it guards future cap changes.
    budget = (40 if gen == 7 else 64) * (1 << 20)

    def _footprint(tm_, tn_, tk_):
        # bf16 x + (bf16 w + int8 mask) + f32 bias + f32 out, all double-buffered.
        return 2 * (tm_ * tk_ * 2 + tk_ * tn_ * 3 + tn_ * 4 + tm_ * tn_ * 4)

    while _footprint(tm, tn, tk) > budget:
        if tk > 512:
            tk = max(128, _round_up(tk // 2, 128))
        elif tn > 256:
            tn = max(128, _round_up(tn // 2, 128))
        elif tm > sub:
            tm = max(sub, _round_up(tm // 2, sub))
        else:
            break
    return tm, tn, tk


# --------------------------------------------------------------------------- #
# Wrapper
# --------------------------------------------------------------------------- #
def _pad2(a, rows, cols):
    r, c = a.shape
    if r == rows and c == cols:
        return a                      # no copy when already tile-aligned
    return jnp.pad(a, ((0, rows - r), (0, cols - c)))


def prepare_mask_linear_params(weight, mask, bias=None, *,
                               compute_dtype=jnp.bfloat16, binary_mask=True):
    """One-time parameter conversion (call at init, NOT per forward call):
    weight -> compute_dtype (bf16), mask -> int8 (4x less mask HBM), bias -> f32."""
    if binary_mask:
        try:
            ok = bool(jnp.all((mask == 0) | (mask == 1)))
        except jax.errors.ConcretizationTypeError:
            ok = True                 # under tracing: skip the eager check
        if not ok:
            raise ValueError("binary_mask=True requires a {0,1} mask; "
                             "pass binary_mask=False for a real-valued mask.")
    w_c = weight.astype(compute_dtype)
    m_c = mask.astype(jnp.int8 if binary_mask else compute_dtype)
    b_c = None if bias is None else bias.astype(jnp.float32)
    return w_c, m_c, b_c


def mask_linear(x, weight, mask, bias=None, *,
                compute_dtype=jnp.bfloat16, binary_mask=True,
                out_dtype=jnp.float32, tm=None, tn=None, tk=None):
    """output = x @ (weight * mask) + bias   (bf16 MXU feed, f32 accumulation).

    Pass compute_dtype=jnp.float32 if f32-exact inputs are required (costs ~2x
    HBM and MXU throughput). Prefer pre-converted params from
    prepare_mask_linear_params() so the per-call path does zero weight/mask copies.
    """
    M, K = x.shape
    K2, N = weight.shape
    assert K == K2, "weight must be (in_features, out_features)"
    assert mask.shape == weight.shape, "mask must match the weight shape"

    gen = _tpu_generation()
    sub = 16 if compute_dtype == jnp.bfloat16 else 8

    tm_d, tn_d, tk_d = _select_tiles(M, K, N, sub=sub, gen=gen)
    tm = tm_d if tm is None else tm
    tn = tn_d if tn is None else tn
    tk = tk_d if tk is None else tk
    assert tm % sub == 0 and tn % 128 == 0 and tk % 128 == 0

    Mp, Kp, Np = _round_up(M, tm), _round_up(K, tk), _round_up(N, tn)
    single_k = (Kp == tk)
    # Multi-K accumulates f32 into the resident output tile; a requested bf16
    # output is cast after the kernel on that (rare, K > 2048) path.
    # TODO(synk): f32 VMEM scratch + last-k cast would also halve writeback bytes there.
    kern_out_dtype = out_dtype if single_k else jnp.float32

    m_dtype = jnp.int8 if binary_mask else compute_dtype

    # Cast only when needed (prefer pre-converted params).
    x_c = x if x.dtype == compute_dtype else x.astype(compute_dtype)
    w_c = weight if weight.dtype == compute_dtype else weight.astype(compute_dtype)
    m_c = mask if mask.dtype == m_dtype else mask.astype(m_dtype)
    if bias is None:
        b_c = jnp.zeros((N,), jnp.float32)
    else:
        b_c = bias if bias.dtype == jnp.float32 else bias.astype(jnp.float32)

    # Zero-pad only when not already tile-aligned (zeros are exact for a matmul).
    x_p = _pad2(x_c, Mp, Kp)
    w_p = _pad2(w_c, Kp, Np)
    m_p = _pad2(m_c, Kp, Np)
    b_p = _pad2(b_c.reshape(1, N), 1, Np)

    # VMEM budget / cost estimate.
    csz = jnp.dtype(compute_dtype).itemsize
    msz = jnp.dtype(m_dtype).itemsize
    osz = jnp.dtype(kern_out_dtype).itemsize
    wm_bufs = 3 if gen == 5 else 2      # deeper weight/mask buffering on v5e only
    footprint = (2 * (tm * tk * csz + tn * 4 + tm * tn * osz)
                 + wm_bufs * (tk * tn * (csz + msz)))
    budget = (40 if gen == 7 else 64) * (1 << 20)
    vmem_limit = int(min(budget, max(footprint + (4 << 20), 32 << 20)))

    cost = pl.CostEstimate(
        flops=2 * Mp * Np * Kp,
        transcendentals=0,
        bytes_accessed=(Mp * Kp * csz + Kp * Np * (csz + msz)
                        + Np * 4 + Mp * Np * osz))

    def _wm_spec(shape, index_map):
        # v5e (lowest HBM BW): triple-buffer the weight/mask stream; VMEM is
        # massively under-used there, so the extra tile each is free.
        if gen == 5:
            try:
                return pl.BlockSpec(shape, index_map, pipeline_mode=pl.Buffered(3))
            except TypeError:
                pass
        return pl.BlockSpec(shape, index_map)

    if single_k:
        kernel = functools.partial(_mask_linear_kernel_single_k,
                                   select_mask=binary_mask)
        grid = (Mp // tm, Np // tn)
        grid_spec = pltpu.PrefetchScalarGridSpec(
            num_scalar_prefetch=0,
            grid=grid,
            in_specs=[
                pl.BlockSpec((tm, Kp), lambda i, j: (i, 0)),   # x    (bf16), K-resident
                _wm_spec((Kp, tn), lambda i, j: (0, j)),       # w    (bf16)
                _wm_spec((Kp, tn), lambda i, j: (0, j)),       # mask (int8)
                pl.BlockSpec((1, tn), lambda i, j: (0, j)),    # bias (f32)
            ],
            out_specs=pl.BlockSpec((tm, tn), lambda i, j: (i, j)),
        )
        semantics = ("parallel", "parallel")
    else:
        kernel = functools.partial(_mask_linear_kernel_multi_k,
                                   select_mask=binary_mask)
        grid = (Mp // tm, Np // tn, Kp // tk)
        grid_spec = pltpu.PrefetchScalarGridSpec(
            num_scalar_prefetch=0,
            grid=grid,
            in_specs=[
                pl.BlockSpec((tm, tk), lambda i, j, k: (i, k)),   # x    (bf16)
                _wm_spec((tk, tn), lambda i, j, k: (k, j)),       # w    (bf16)
                _wm_spec((tk, tn), lambda i, j, k: (k, j)),       # mask (int8)
                pl.BlockSpec((1, tn), lambda i, j, k: (0, j)),    # bias (f32)
            ],
            out_specs=pl.BlockSpec((tm, tn), lambda i, j, k: (i, j)),
        )
        semantics = ("parallel", "parallel", "arbitrary")

    out = pl.pallas_call(
        kernel,
        out_shape=jax.ShapeDtypeStruct((Mp, Np), kern_out_dtype),
        grid_spec=grid_spec,
        compiler_params=pltpu.CompilerParams(
            dimension_semantics=semantics,
            vmem_limit_bytes=vmem_limit),
        cost_estimate=cost,
    )(x_p, w_p, m_p, b_p)

    out = out[:M, :N]
    if out.dtype != out_dtype:
        out = out.astype(out_dtype)
    return out


# --------------------------------------------------------------------------- #
# References
# --------------------------------------------------------------------------- #
def mask_linear_ref_f32(x, w, m, b):
    return x @ (w * m) + b[None, :]


def mask_linear_ref_bf16(x, w, m, b):
    # Reference with the same bf16 input quantization the kernel uses.
    xb = x.astype(jnp.bfloat16).astype(jnp.float32)
    wb = (w.astype(jnp.bfloat16) * m.astype(jnp.bfloat16)).astype(jnp.float32)
    return xb @ wb + b[None, :]


if __name__ == "__main__":
    key = jax.random.PRNGKey(0)
    k_x, k_w, k_b, k_m, k_x2, k_w2, k_b2, k_m2 = jax.random.split(key, 8)

    # ---- Test 1: module-sized shapes, single-K fast path ----
    batch, in_features, out_features = 8, 32, 32
    # reset_parameters(): uniform(-stdv, stdv), stdv = 1/sqrt(out_features)
    stdv = 1.0 / math.sqrt(out_features)
    weight = jax.random.uniform(k_w, (in_features, out_features),
                                jnp.float32, -stdv, stdv)
    bias = jax.random.uniform(k_b, (out_features,), jnp.float32, -stdv, stdv)
    x = jax.random.normal(k_x, (batch, in_features), jnp.float32)
    mask = (jax.random.uniform(k_m, (in_features, out_features)) > 0.5
            ).astype(jnp.float32)

    # Convert weight/mask/bias once (init-time), not per forward call.
    w_c, m_c, b_c = prepare_mask_linear_params(weight, mask, bias)

    out = jax.block_until_ready(mask_linear(x, w_c, m_c, b_c))
    assert out.shape == (batch, out_features)
    # Tight check vs a reference using identical bf16 input quantization.
    assert jnp.allclose(out, mask_linear_ref_bf16(x, weight, mask, bias),
                        atol=1e-4, rtol=1e-4)
    # Loose check vs the full-f32 PyTorch-equivalent reference.
    assert jnp.allclose(out, mask_linear_ref_f32(x, weight, mask, bias),
                        atol=2e-2, rtol=2e-2)

    # ---- Test 2: force the multi-K accumulation path with explicit small tiles ----
    M2, K2, N2 = 8, 256, 128
    w2 = jax.random.uniform(k_w2, (K2, N2), jnp.float32, -stdv, stdv)
    b2 = jax.random.uniform(k_b2, (N2,), jnp.float32, -stdv, stdv)
    x2 = jax.random.normal(k_x2, (M2, K2), jnp.float32)
    m2 = (jax.random.uniform(k_m2, (K2, N2)) > 0.5).astype(jnp.float32)

    out2 = jax.block_until_ready(mask_linear(x2, w2, m2, b2, tk=128))
    assert out2.shape == (M2, N2)
    assert jnp.allclose(out2, mask_linear_ref_bf16(x2, w2, m2, b2),
                        atol=1e-3, rtol=1e-3)

    print("KERNEL_OK")
</pallas_src>

<mosaic_0001>
module attributes {stable_mosaic.version = 11 : i64} {
  func.func @_mask_linear_kernel_single_k(%arg0: i32, %arg1: i32, %arg2: memref<16x128xbf16, #tpu.memory_space<vmem>>, %arg3: memref<128x128xbf16, #tpu.memory_space<vmem>>, %arg4: memref<128x128xi8, #tpu.memory_space<vmem>>, %arg5: memref<1x128xf32, #tpu.memory_space<vmem>>, %arg6: memref<16x128xf32, #tpu.memory_space<vmem>>) attributes {dimension_semantics = [#tpu.dimension_semantics<parallel>, #tpu.dimension_semantics<parallel>], iteration_bounds = array<i64: 1, 1>, scalar_prefetch = 0 : i64, scratch_operands = 0 : i64, tpu.core_type = #tpu.core_type<tc>, window_params = [{transform_indices = @transform_0, window_bounds = array<i64: 16, 128>}, {transform_indices = @transform_1, window_bounds = array<i64: 128, 128>}, {transform_indices = @transform_2, window_bounds = array<i64: 128, 128>}, {transform_indices = @transform_3, window_bounds = array<i64: 1, 128>}, {transform_indices = @transform_4, window_bounds = array<i64: 16, 128>}]} {
    %c0 = arith.constant 0 : index
    %c0_0 = arith.constant 0 : index
    %0 = vector.load %arg4[%c0, %c0_0] : memref<128x128xi8, #tpu.memory_space<vmem>>, vector<128x128xi8>
    %c0_i8 = arith.constant 0 : i8
    %1 = vector.broadcast %c0_i8 : i8 to vector<128x128xi8>
    %2 = arith.cmpi ne, %0, %1 : vector<128x128xi8>
    %c0_1 = arith.constant 0 : index
    %c0_2 = arith.constant 0 : index
    %3 = vector.load %arg3[%c0_1, %c0_2] : memref<128x128xbf16, #tpu.memory_space<vmem>>, vector<128x128xbf16>
    %cst = arith.constant 0.000000e+00 : bf16
    %4 = vector.broadcast %cst : bf16 to vector<128x128xbf16>
    %5 = arith.select %2, %3, %4 : vector<128x128xi1>, vector<128x128xbf16>
    %c0_3 = arith.constant 0 : index
    %c0_4 = arith.constant 0 : index
    %6 = vector.load %arg2[%c0_3, %c0_4] : memref<16x128xbf16, #tpu.memory_space<vmem>>, vector<16x128xbf16>
    %cst_5 = arith.constant dense<0.000000e+00> : vector<16x128xf32>
    %7 = tpu.matmul %6, %5, %cst_5 {dimension_numbers = #tpu.dot_dimension_numbers<[1], [0], [0], [1], [0, 0, 1, 1], [], []>} : vector<16x128xbf16>, vector<128x128xbf16>, vector<16x128xf32> -> vector<16x128xf32>
    %c0_6 = arith.constant 0 : index
    %c0_7 = arith.constant 0 : index
    %8 = vector.load %arg5[%c0_6, %c0_7] : memref<1x128xf32, #tpu.memory_space<vmem>>, vector<1x128xf32>
    %9 = vector.broadcast %8 : vector<1x128xf32> to vector<16x128xf32>
    %10 = arith.addf %7, %9 : vector<16x128xf32>
    %c0_8 = arith.constant 0 : index
    %c0_9 = arith.constant 0 : index
    %11 = vector.load %arg6[%c0_8, %c0_9] : memref<16x128xf32, #tpu.memory_space<vmem>>, vector<16x128xf32>
    tpu.vector_store %arg6[%c0_8, %c0_9], %10 {strides = array<i32>} : memref<16x128xf32, #tpu.memory_space<vmem>>, vector<16x128xf32>,
    return
  }
  func.func @transform_0(%arg0: i32, %arg1: i32) -> (i32, i32) {
    %c0_i32 = arith.constant 0 : i32
    %c0_i32_0 = arith.constant 0 : i32
    return %arg0, %c0_i32 : i32, i32
  }
  func.func @transform_1(%arg0: i32, %arg1: i32) -> (i32, i32) {
    %c0_i32 = arith.constant 0 : i32
    %c0_i32_0 = arith.constant 0 : i32
    return %c0_i32, %arg1 : i32, i32
  }
  func.func @transform_2(%arg0: i32, %arg1: i32) -> (i32, i32) {
    %c0_i32 = arith.constant 0 : i32
    %c0_i32_0 = arith.constant 0 : i32
    return %c0_i32, %arg1 : i32, i32
  }
  func.func @transform_3(%arg0: i32, %arg1: i32) -> (i32, i32) {
    %c0_i32 = arith.constant 0 : i32
    %c0_i32_0 = arith.constant 0 : i32
    return %c0_i32, %arg1 : i32, i32
  }
  func.func @transform_4(%arg0: i32, %arg1: i32) -> (i32, i32) {
    %c0_i32 = arith.constant 0 : i32
    return %arg0, %arg1 : i32, i32
  }
}

</mosaic_0001>

<llo_original>
// kernel: tpu_custom_call.1
$region0: #{tpu_custom_call.1}
  #allocation0 [shape = 'u32[]', space=smem, size = 0x4, offset = 0x4, fixed_abs, tag = 'smem constant byte address 0x4 - core index']
  #allocation1 [shape = 'u32[144,128]{1,0:T(1,128)}', space=vmem, size = 0x12000, scoped, tag = 'internal scratch']
  %s0 = inlined_call_operand.hbm [shape: bf16[16,128], index: 0, kind: input, shape index: {}]
  %s1 = inlined_call_operand.hbm [shape: bf16[128,128], index: 1, kind: input, shape index: {}]
  %s2 = inlined_call_operand.hbm [shape: s8[128,128], index: 2, kind: input, shape index: {}]
  %s3 = inlined_call_operand.vmem [shape: f32[1,128], index: 3, kind: input, shape index: {}]
  %s4 = inlined_call_operand.hbm [shape: f32[16,128], index: 4, kind: output, shape index: {}]
  %s5 = sld [smem:[#allocation0]]
  $region38: #{tpu_custom_call.1} parent=0
    _
  %s7 = ssub.s32 1, %s5
  %s8 = scalar_select 0, %s7, %s5
  $region1: #{tpu_custom_call.1} parent=0
    #allocation2 [shape = 'u8[4096]{0}', space=vmem, size = 0x1000, scoped, tag = 'input window, operand 0, single buffered']
    #allocation3 [shape = 's32[1]{0}', space=sflag, size = 0x4, scoped, tag = 'scoped memory for tpu_custom_call.1']
    #allocation4 [shape = 's32[1]{0}', space=sflag, size = 0x4, scoped, tag = 'scoped memory for tpu_custom_call.1']
    #allocation5 [shape = 'u8[32768]{0}', space=vmem, size = 0x8000, scoped, tag = 'input window, operand 1, single buffered']
    #allocation6 [shape = 's32[1]{0}', space=sflag, size = 0x4, scoped, tag = 'scoped memory for tpu_custom_call.1']
    #allocation7 [shape = 'u8[16384]{0}', space=vmem, size = 0x4000, scoped, tag = 'input window, operand 2, single buffered']
    #allocation8 [shape = 'u8[8192]{0}', space=vmem, size = 0x2000, scoped, tag = 'output window, operand 0, single buffered']
    %9 = vsyncpa [#allocation3], 0
    %10 = vsyncpa [#allocation6], 0
    %11 = vsyncpa [#allocation4], 0
    // Predicated region
    $region2: #{tpu_custom_call.1} parent=1 // pred_check
      _
    $region3: #{tpu_custom_call.1} parent=1 // pred_check_branch
      %13 = sbr.rel (0) target = $region5
    $region4: #{tpu_custom_call.1} parent=1 // pred_region
      %s15 = ssub.s32 128, 128
      %16 = vsyncadd [#allocation3], %s15
      %s17 = sshll.u32 [#allocation2], 4
      %s18 = int_to_ptr.vmem [resolvable:$true] %s17
      %23 = dma.hbm_to_vmem [thread:$0]  %s0, 128, %s18, [#allocation3], 64, 64, 4
    $region5: #{tpu_custom_call.1} parent=1 // pred_fallthru
      _
    // Predicated region
    $region6: #{tpu_custom_call.1} parent=1 // pred_check
      _
    $region7: #{tpu_custom_call.1} parent=1 // pred_check_branch
      %25 = sbr.rel (0) target = $region9
    $region8: #{tpu_custom_call.1} parent=1 // pred_region
      %s27 = ssub.s32 1024, 1024
      %28 = vsyncadd [#allocation6], %s27
      %s29 = sshll.u32 [#allocation5], 4
      %s30 = int_to_ptr.vmem [resolvable:$true] %s29
      %35 = dma.hbm_to_vmem [thread:$0]  %s1, 1024, %s30, [#allocation6], 64, 64, 4
    $region9: #{tpu_custom_call.1} parent=1 // pred_fallthru
      _
    // Predicated region
    $region10: #{tpu_custom_call.1} parent=1 // pred_check
      _
    $region11: #{tpu_custom_call.1} parent=1 // pred_check_branch
      %37 = sbr.rel (0) target = $region13
    $region12: #{tpu_custom_call.1} parent=1 // pred_region
      %s39 = ssub.s32 512, 512
      %40 = vsyncadd [#allocation6], %s39
      %s41 = sshll.u32 [#allocation7], 4
      %s42 = int_to_ptr.vmem [resolvable:$true] %s41
      %47 = dma.hbm_to_vmem [thread:$0]  %s2, 512, %s42, [#allocation6], 128, 128, 8
    $region13: #{tpu_custom_call.1} parent=1 // pred_fallthru
      _
    // Predicated region
    $region14: #{tpu_custom_call.1} parent=1 // pred_check
      _
    $region15: #{tpu_custom_call.1} parent=1 // pred_check_branch
      %49 = sbr.rel (0) target = $region17
    $region16: #{tpu_custom_call.1} parent=1 // pred_region
      _
    $region17: #{tpu_custom_call.1} parent=1 // pred_fallthru
      _
    // Predicated region
    $region18: #{tpu_custom_call.1} parent=1 // pred_check
      _
    $region19: #{tpu_custom_call.1} parent=1 // pred_check_branch
      %51 = sbr.rel (0) target = $region21
    $region20: #{tpu_custom_call.1} parent=1 // pred_region
      %52 = dma.done [#allocation3], 128
    $region21: #{tpu_custom_call.1} parent=1 // pred_fallthru
      _
    // Predicated region
    $region22: #{tpu_custom_call.1} parent=1 // pred_check
      _
    $region23: #{tpu_custom_call.1} parent=1 // pred_check_branch
      %54 = sbr.rel (0) target = $region25
    $region24: #{tpu_custom_call.1} parent=1 // pred_region
      %55 = dma.done [#allocation6], 1024
    $region25: #{tpu_custom_call.1} parent=1 // pred_fallthru
      _
    // Predicated region
    $region26: #{tpu_custom_call.1} parent=1 // pred_check
      _
    $region27: #{tpu_custom_call.1} parent=1 // pred_check_branch
      %57 = sbr.rel (0) target = $region29
    $region28: #{tpu_custom_call.1} parent=1 // pred_region
      %58 = dma.done [#allocation6], 512
    $region29: #{tpu_custom_call.1} parent=1 // pred_fallthru
      _
    %v63 = vld [vmem:[#allocation7] sm:$0xff]
    %v64 = vld [vmem:[#allocation7 + $0x8] sm:$0xff]
    %v65 = vld [vmem:[#allocation7 + $0x10] sm:$0xff]
    %v66 = vld [vmem:[#allocation7 + $0x18] sm:$0xff]
    %vm67 = vnez %v63
    %vm68 = vnez %v64
    %vm69 = vnez %v65
    %vm70 = vnez %v66
    %v71 = vld [vmem:[#allocation5] sm:$0xf]
    %v72 = vld [vmem:[#allocation5 + $0x4] sm:$0xf]
    %v73 = vld [vmem:[#allocation5 + $0x8] sm:$0xf]
    %v74 = vld [vmem:[#allocation5 + $0xc] sm:$0xf]
    %v75 = vld [vmem:[#allocation5 + $0x10] sm:$0xf]
    %v76 = vld [vmem:[#allocation5 + $0x14] sm:$0xf]
    %v77 = vld [vmem:[#allocation5 + $0x18] sm:$0xf]
    %v78 = vld [vmem:[#allocation5 + $0x1c] sm:$0xf]
    %v79 = vld [vmem:[#allocation5 + $0x20] sm:$0xf]
    %v80 = vld [vmem:[#allocation5 + $0x24] sm:$0xf]
    %v81 = vld [vmem:[#allocation5 + $0x28] sm:$0xf]
    %v82 = vld [vmem:[#allocation5 + $0x2c] sm:$0xf]
    %v83 = vld [vmem:[#allocation5 + $0x30] sm:$0xf]
    %v84 = vld [vmem:[#allocation5 + $0x34] sm:$0xf]
    %v85 = vld [vmem:[#allocation5 + $0x38] sm:$0xf]
    %v86 = vld [vmem:[#allocation5 + $0x3c] sm:$0xf]
    %v87 = vsel %vm67, 16843009, 0
    %v88 = vsel %vm68, 16843009, 0
    %v89 = vsel %vm69, 16843009, 0
    %v90 = vsel %vm70, 16843009, 0
    %v91 = vunpack.c.0.s8 %v87
    %v92 = vunpack.c.1.s8 %v87
    %v93 = vunpack.c.2.s8 %v87
    %v94 = vunpack.c.3.s8 %v87
    %v95 = vunpack.c.0.s8 %v88
    %v96 = vunpack.c.1.s8 %v88
    %v97 = vunpack.c.2.s8 %v88
    %v98 = vunpack.c.3.s8 %v88
    %v99 = vunpack.c.0.s8 %v89
    %v100 = vunpack.c.1.s8 %v89
    %v101 = vunpack.c.2.s8 %v89
    %v102 = vunpack.c.3.s8 %v89
    %v103 = vunpack.c.0.s8 %v90
    %v104 = vunpack.c.1.s8 %v90
    %v105 = vunpack.c.2.s8 %v90
    %v106 = vunpack.c.3.s8 %v90
    %v107 = vpack.c.b16 %v91, %v91
    %v108 = vpack.c.b8 %v107, %v107
    %v109 = vpack.c.b16 %v92, %v92
    %v110 = vpack.c.b8 %v109, %v109
    %v111 = vpack.c.b16 %v93, %v93
    %v112 = vpack.c.b8 %v111, %v111
    %v113 = vpack.c.b16 %v94, %v94
    %v114 = vpack.c.b8 %v113, %v113
    %v115 = vpack.c.b16 %v95, %v95
    %v116 = vpack.c.b8 %v115, %v115
    %v117 = vpack.c.b16 %v96, %v96
    %v118 = vpack.c.b8 %v117, %v117
    %v119 = vpack.c.b16 %v97, %v97
    %v120 = vpack.c.b8 %v119, %v119
    %v121 = vpack.c.b16 %v98, %v98
    %v122 = vpack.c.b8 %v121, %v121
    %v123 = vpack.c.b16 %v99, %v99
    %v124 = vpack.c.b8 %v123, %v123
    %v125 = vpack.c.b16 %v100, %v100
    %v126 = vpack.c.b8 %v125, %v125
    %v127 = vpack.c.b16 %v101, %v101
    %v128 = vpack.c.b8 %v127, %v127
    %v129 = vpack.c.b16 %v102, %v102
    %v130 = vpack.c.b8 %v129, %v129
    %v131 = vpack.c.b16 %v103, %v103
    %v132 = vpack.c.b8 %v131, %v131
    %v133 = vpack.c.b16 %v104, %v104
    %v134 = vpack.c.b8 %v133, %v133
    %v135 = vpack.c.b16 %v105, %v105
    %v136 = vpack.c.b8 %v135, %v135
    %v137 = vpack.c.b16 %v106, %v106
    %v138 = vpack.c.b8 %v137, %v137
    %vm139 = vnez %v108
    %vm140 = vnez %v110
    %vm141 = vnez %v112
    %vm142 = vnez %v114
    %vm143 = vnez %v116
    %vm144 = vnez %v118
    %vm145 = vnez %v120
    %vm146 = vnez %v122
    %vm147 = vnez %v124
    %vm148 = vnez %v126
    %vm149 = vnez %v128
    %vm150 = vnez %v130
    %vm151 = vnez %v132
    %vm152 = vnez %v134
    %vm153 = vnez %v136
    %vm154 = vnez %v138
    %v155 = vsel %vm139, 16843009, 0
    %v156 = vsel %vm140, 16843009, 0
    %v157 = vsel %vm141, 16843009, 0
    %v158 = vsel %vm142, 16843009, 0
    %v159 = vsel %vm143, 16843009, 0
    %v160 = vsel %vm144, 16843009, 0
    %v161 = vsel %vm145, 16843009, 0
    %v162 = vsel %vm146, 16843009, 0
    %v163 = vsel %vm147, 16843009, 0
    %v164 = vsel %vm148, 16843009, 0
    %v165 = vsel %vm149, 16843009, 0
    %v166 = vsel %vm150, 16843009, 0
    %v167 = vsel %vm151, 16843009, 0
    %v168 = vsel %vm152, 16843009, 0
    %v169 = vsel %vm153, 16843009, 0
    %v170 = vsel %vm154, 16843009, 0
    %v171 = vunpack.c.1.s8 %v155
    %v172 = vunpack.c.0.s8 %v155
    %v173 = vpack.c.b16 %v171, %v172
    %v174 = vunpack.c.1.s8 %v156
    %v175 = vunpack.c.0.s8 %v156
    %v176 = vpack.c.b16 %v174, %v175
    %v177 = vunpack.c.1.s8 %v157
    %v178 = vunpack.c.0.s8 %v157
    %v179 = vpack.c.b16 %v177, %v178
    %v180 = vunpack.c.1.s8 %v158
    %v181 = vunpack.c.0.s8 %v158
    %v182 = vpack.c.b16 %v180, %v181
    %v183 = vunpack.c.1.s8 %v159
    %v184 = vunpack.c.0.s8 %v159
    %v185 = vpack.c.b16 %v183, %v184
    %v186 = vunpack.c.1.s8 %v160
    %v187 = vunpack.c.0.s8 %v160
    %v188 = vpack.c.b16 %v186, %v187
    %v189 = vunpack.c.1.s8 %v161
    %v190 = vunpack.c.0.s8 %v161
    %v191 = vpack.c.b16 %v189, %v190
    %v192 = vunpack.c.1.s8 %v162
    %v193 = vunpack.c.0.s8 %v162
    %v194 = vpack.c.b16 %v192, %v193
    %v195 = vunpack.c.1.s8 %v163
    %v196 = vunpack.c.0.s8 %v163
    %v197 = vpack.c.b16 %v195, %v196
    %v198 = vunpack.c.1.s8 %v164
    %v199 = vunpack.c.0.s8 %v164
    %v200 = vpack.c.b16 %v198, %v199
    %v201 = vunpack.c.1.s8 %v165
    %v202 = vunpack.c.0.s8 %v165
    %v203 = vpack.c.b16 %v201, %v202
    %v204 = vunpack.c.1.s8 %v166
    %v205 = vunpack.c.0.s8 %v166
    %v206 = vpack.c.b16 %v204, %v205
    %v207 = vunpack.c.1.s8 %v167
    %v208 = vunpack.c.0.s8 %v167
    %v209 = vpack.c.b16 %v207, %v208
    %v210 = vunpack.c.1.s8 %v168
    %v211 = vunpack.c.0.s8 %v168
    %v212 = vpack.c.b16 %v210, %v211
    %v213 = vunpack.c.1.s8 %v169
    %v214 = vunpack.c.0.s8 %v169
    %v215 = vpack.c.b16 %v213, %v214
    %v216 = vunpack.c.1.s8 %v170
    %v217 = vunpack.c.0.s8 %v170
    %v218 = vpack.c.b16 %v216, %v217
    %vm219 = vcmp.ne.s16.totalorder %v173, 0
    %vm220 = vcmp.ne.s16.totalorder %v176, 0
    %vm221 = vcmp.ne.s16.totalorder %v179, 0
    %vm222 = vcmp.ne.s16.totalorder %v182, 0
    %vm223 = vcmp.ne.s16.totalorder %v185, 0
    %vm224 = vcmp.ne.s16.totalorder %v188, 0
    %vm225 = vcmp.ne.s16.totalorder %v191, 0
    %vm226 = vcmp.ne.s16.totalorder %v194, 0
    %vm227 = vcmp.ne.s16.totalorder %v197, 0
    %vm228 = vcmp.ne.s16.totalorder %v200, 0
    %vm229 = vcmp.ne.s16.totalorder %v203, 0
    %vm230 = vcmp.ne.s16.totalorder %v206, 0
    %vm231 = vcmp.ne.s16.totalorder %v209, 0
    %vm232 = vcmp.ne.s16.totalorder %v212, 0
    %vm233 = vcmp.ne.s16.totalorder %v215, 0
    %vm234 = vcmp.ne.s16.totalorder %v218, 0
    %v235 = vsel %vm219, %v71, 0
    %v236 = vsel %vm220, %v72, 0
    %v237 = vsel %vm221, %v73, 0
    %v238 = vsel %vm222, %v74, 0
    %v239 = vsel %vm223, %v75, 0
    %v240 = vsel %vm224, %v76, 0
    %v241 = vsel %vm225, %v77, 0
    %v242 = vsel %vm226, %v78, 0
    %v243 = vsel %vm227, %v79, 0
    %v244 = vsel %vm228, %v80, 0
    %v245 = vsel %vm229, %v81, 0
    %v246 = vsel %vm230, %v82, 0
    %v247 = vsel %vm231, %v83, 0
    %v248 = vsel %vm232, %v84, 0
    %v249 = vsel %vm233, %v85, 0
    %v250 = vsel %vm234, %v86, 0
    %v251 = vld [vmem:[#allocation2] sm:$0xf]
    %v252 = vld [vmem:[#allocation2 + $0x4] sm:$0xf]
    %v253 = vld [vmem:[%s3] sm:$0x1]
    %v255 = vlaneseq
    %v256 = vshrl.u32 %v255, 7
    %v257 = vsub.s32 0, %v256
    %v258 = vrot.slane %v253, %v257
    %v262 = vunpack.c.l.b16 %v251
    %v263 = vunpack.c.l.b16 %v252
    %v264 = vpack.c.b16 %v263, %v262
    %v282 = vunpack.c.l.b16 %v235
    %v283 = vunpack.c.l.b16 %v236
    %v284 = vunpack.c.l.b16 %v237
    %v285 = vunpack.c.l.b16 %v238
    %v286 = vunpack.c.l.b16 %v239
    %v287 = vunpack.c.l.b16 %v240
    %v288 = vunpack.c.l.b16 %v241
    %v289 = vunpack.c.l.b16 %v242
    %v290 = vunpack.c.l.b16 %v243
    %v291 = vunpack.c.l.b16 %v244
    %v292 = vunpack.c.l.b16 %v245
    %v293 = vunpack.c.l.b16 %v246
    %v294 = vunpack.c.l.b16 %v247
    %v295 = vunpack.c.l.b16 %v248
    %v296 = vunpack.c.l.b16 %v249
    %v297 = vunpack.c.l.b16 %v250
    %v298 = vpack.c.b16 %v283, %v282
    %v299 = vpack.c.b16 %v285, %v284
    %v300 = vpack.c.b16 %v287, %v286
    %v301 = vpack.c.b16 %v289, %v288
    %v302 = vpack.c.b16 %v291, %v290
    %v303 = vpack.c.b16 %v293, %v292
    %v304 = vpack.c.b16 %v295, %v294
    %v305 = vpack.c.b16 %v297, %v296
    %314 = vmatprep.subr.bf16.mxu0 0
    %315 = vmatpush1.bf16.msra.mxu0 %v305
    %316 = vmatprep.subr.bf16.mxu0 0
    %317 = vmatpush1.bf16.msra.mxu0 %v304
    %318 = vmatprep.subr.bf16.mxu0 0
    %319 = vmatpush1.bf16.msra.mxu0 %v303
    %320 = vmatprep.subr.bf16.mxu0 0
    %321 = vmatpush1.bf16.msra.mxu0 %v302
    %322 = vmatprep.subr.bf16.mxu0 0
    %323 = vmatpush1.bf16.msra.mxu0 %v301
    %324 = vmatprep.subr.bf16.mxu0 0
    %325 = vmatpush1.bf16.msra.mxu0 %v300
    %326 = vmatprep.subr.bf16.mxu0 0
    %327 = vmatpush1.bf16.msra.mxu0 %v299
    %328 = vmatprep.subr.bf16.mxu0 0
    %329 = vmatpush1.bf16.msra.mxu0 %v298
    %330 = vmatprep.subr.bf16.mxu0 0
    %331 = vmatpush2.bf16.msra.mxu0 0
    %332 = vmatprep.subr.bf16.mxu0 0
    %333 = vmatpush2.bf16.msra.mxu0 0
    %334 = vmatprep.subr.bf16.mxu0 0
    %335 = vmatpush2.bf16.msra.mxu0 0
    %336 = vmatprep.subr.bf16.mxu0 0
    %337 = vmatpush2.bf16.msra.mxu0 0
    %338 = vmatprep.subr.bf16.mxu0 0
    %339 = vmatpush2.bf16.msra.mxu0 0
    %340 = vmatprep.subr.bf16.mxu0 0
    %341 = vmatpush2.bf16.msra.mxu0 0
    %342 = vmatprep.subr.bf16.mxu0 0
    %343 = vmatpush2.bf16.msra.mxu0 0
    %344 = vmatprep.subr.bf16.mxu0 0
    %345 = vmatpush2.bf16.msra.mxu0 0
    %346 = vmatprep.mubr.bf16.mxu0 0
    %347 = vmatmul.mubr.bf16.gmra.mxu0 %v264
    %v348 = vpop.f32.mrf.mxu0
    %v349 = vadd.f32 %v258, %v348
    %v350 = vpop.f32.mrf.mxu0
    %v351 = vpop.f32.mrf.mxu0
    %v352 = vadd.f32 %v258, %v351
    %v353 = vpop.f32.mrf.mxu0
    %354 = vdwg.mxu0
    %355 = vst [vmem:[#allocation8] sm:$0xff] %v349
    %356 = vst [vmem:[#allocation8 + $0x8] sm:$0xff] %v352
    // Predicated region
    $region30: #{tpu_custom_call.1} parent=1 // pred_check
      _
    $region31: #{tpu_custom_call.1} parent=1 // pred_check_branch
      %358 = sbr.rel (0) target = $region33
    $region32: #{tpu_custom_call.1} parent=1 // pred_region
      %s360 = ssub.s32 256, 256
      %361 = vsyncadd [#allocation4], %s360
      %s362 = sshll.u32 [#allocation8], 4
      %s363 = int_to_ptr.vmem [resolvable:$true] %s362
      %368 = dma.vmem_to_hbm [thread:$0]  %s363, 256, %s4, [#allocation4], 128, 128, 8
    $region33: #{tpu_custom_call.1} parent=1 // pred_fallthru
      _
    // Predicated region
    $region34: #{tpu_custom_call.1} parent=1 // pred_check
      _
    $region35: #{tpu_custom_call.1} parent=1 // pred_check_branch
      %370 = sbr.rel (0) target = $region37
    $region36: #{tpu_custom_call.1} parent=1 // pred_region
      %371 = dma.done [#allocation4], 256
    $region37: #{tpu_custom_call.1} parent=1 // pred_fallthru
      _
    %372 = vsyncpa [#allocation3], 1
    %373 = vsyncpa [#allocation6], 1
    %374 = vsyncpa [#allocation4], 1

</llo_original>
